<compile_context>
chip_gen: v6e
topology: v6e:2x2x1
jax: 0.10.0
libtpu: 0.0.40
codegen_flags: <defaults>
</compile_context>

<pallas_src>
import jax
import jax.numpy as jnp
from jax.experimental import pallas as pl
from jax.experimental.pallas import tpu as pltpu


def _expression_loss_kernel(att_ref, on_ref, os_ref, cn_ref, cs_ref, out_ref):
    """att_ref: SMEM f32[1,1]  attention_argument
       on_ref : VMEM [B, C]    output_neutral (CE target 0)
       os_ref : VMEM [B, C]    output_smile   (CE target 1)
       cn_ref : VMEM [B, C]    com_neutral    (attention class 0)
       cs_ref : VMEM [B, C]    com_smile      (attention class 1)
       out_ref: SMEM f32[1]    total loss."""

    def lse_and_target(ref, cls):
        x = ref[...].astype(jnp.float32)            # [B, C]
        c = x.shape[-1]
        tgt = x[:, cls:cls + 1]                     # static lane slice, [B, 1]
        if c == 2:
            # Pairwise max-stabilized logaddexp: pure VPU/EUP, no XLU reduce.
            a = x[:, 0:1]
            b = x[:, 1:2]
            m = jnp.maximum(a, b)
            lse = m + jnp.log(jnp.exp(a - m) + jnp.exp(b - m))
        else:
            # General-C fallback (kernel assumes cls < C).
            m = jnp.max(x, axis=-1, keepdims=True)
            lse = m + jnp.log(jnp.sum(jnp.exp(x - m), axis=-1, keepdims=True))
        return lse, tgt

    inv_b = 1.0 / on_ref.shape[0]                   # static Python float

    lse_on, t_on = lse_and_target(on_ref, 0)        # output_neutral, class 0
    lse_os, t_os = lse_and_target(os_ref, 1)        # output_smile,   class 1
    lse_cn, t_cn = lse_and_target(cn_ref, 0)        # com_neutral,    class 0
    lse_cs, t_cs = lse_and_target(cs_ref, 1)        # com_smile,      class 1

    # Cross-entropy: mean over batch of (lse - target_logit).
    ce_total = (jnp.sum(lse_on - t_on) + jnp.sum(lse_os - t_os)) * inv_b

    # Attention: mean over batch of softmax[:, cls] = exp(target_logit - lse).
    att_total = (jnp.sum(jnp.exp(t_cn - lse_cn))
                 + jnp.sum(jnp.exp(t_cs - lse_cs))) * inv_b

    # Scalar FMA on the scalar unit; single scalar result.
    out_ref[0] = ce_total + att_ref[0, 0] * att_total


def expression_loss(output_neutral, output_smile, com_neutral, com_smile,
                    attention_argument):
    """One pallas_call: four VMEM logit operands + one SMEM scalar -> scalar."""
    B, C = output_neutral.shape
    att = jnp.asarray(attention_argument, jnp.float32).reshape(1, 1)

    bytes_in = sum(x.size * x.dtype.itemsize
                   for x in (output_neutral, output_smile, com_neutral, com_smile))
    cost = pl.CostEstimate(flops=40 * B * C,
                           transcendentals=12 * B,
                           bytes_accessed=bytes_in + 8)

    out = pl.pallas_call(
        _expression_loss_kernel,
        out_shape=jax.ShapeDtypeStruct((1,), jnp.float32),
        in_specs=[
            pl.BlockSpec(memory_space=pltpu.MemorySpace.SMEM),   # attention_argument
            pl.BlockSpec(memory_space=pltpu.MemorySpace.VMEM),   # output_neutral
            pl.BlockSpec(memory_space=pltpu.MemorySpace.VMEM),   # output_smile
            pl.BlockSpec(memory_space=pltpu.MemorySpace.VMEM),   # com_neutral
            pl.BlockSpec(memory_space=pltpu.MemorySpace.VMEM),   # com_smile
        ],
        out_specs=pl.BlockSpec(memory_space=pltpu.MemorySpace.SMEM),
        cost_estimate=cost,
    )(att, output_neutral, output_smile, com_neutral, com_smile)

    return out[0]


if __name__ == "__main__":
    key = jax.random.PRNGKey(0)
    k1, k2, k3, k4 = jax.random.split(key, 4)

    B, C = 8, 2  # args.batch_size = 8; 2 expression classes (neutral / smile)
    output_neutral = jax.random.normal(k1, (B, C), jnp.float32)
    output_smile = jax.random.normal(k2, (B, C), jnp.float32)
    com_neutral = jax.random.normal(k3, (B, C), jnp.float32)
    com_smile = jax.random.normal(k4, (B, C), jnp.float32)
    attention_argument = 0.5

    loss = expression_loss(output_neutral, output_smile, com_neutral, com_smile,
                           attention_argument)
    jax.block_until_ready(loss)

    # Pure-JAX reference for sanity.
    def _ref():
        def ce(logits, cls):
            lse = jax.nn.logsumexp(logits, axis=1)
            return jnp.mean(lse - logits[:, cls])

        def att(logits, cls):
            return jnp.mean(jax.nn.softmax(logits, axis=1)[:, cls])

        return (ce(output_neutral, 0) + ce(output_smile, 1)
                + attention_argument * att(com_neutral, 0)
                + attention_argument * att(com_smile, 1))

    assert jnp.allclose(loss, _ref(), atol=1e-5, rtol=1e-5), (loss, _ref())
    print("KERNEL_OK")
</pallas_src>

<mosaic_0001>
module attributes {stable_mosaic.version = 11 : i64} {
  func.func @_expression_loss_kernel(%arg0: memref<1x1xf32, #tpu.memory_space<smem>>, %arg1: memref<8x2xf32, #tpu.memory_space<vmem>>, %arg2: memref<8x2xf32, #tpu.memory_space<vmem>>, %arg3: memref<8x2xf32, #tpu.memory_space<vmem>>, %arg4: memref<8x2xf32, #tpu.memory_space<vmem>>, %arg5: memref<1xf32, #tpu.memory_space<smem>>) attributes {dimension_semantics = [], scalar_prefetch = 0 : i64, scratch_operands = 0 : i64, tpu.core_type = #tpu.core_type<tc>} {
    %c0 = arith.constant 0 : index
    %c0_0 = arith.constant 0 : index
    %0 = vector.load %arg1[%c0, %c0_0] : memref<8x2xf32, #tpu.memory_space<vmem>>, vector<8x2xf32>
    %1 = vector.extract_strided_slice %0 {offsets = [0, 0], sizes = [8, 1], strides = [1, 1]} : vector<8x2xf32> to vector<8x1xf32>
    %2 = vector.extract_strided_slice %0 {offsets = [0, 0], sizes = [8, 1], strides = [1, 1]} : vector<8x2xf32> to vector<8x1xf32>
    %3 = vector.extract_strided_slice %0 {offsets = [0, 1], sizes = [8, 1], strides = [1, 1]} : vector<8x2xf32> to vector<8x1xf32>
    %4 = arith.maximumf %2, %3 : vector<8x1xf32>
    %5 = arith.subf %2, %4 : vector<8x1xf32>
    %6 = math.exp %5 : vector<8x1xf32>
    %7 = arith.subf %3, %4 : vector<8x1xf32>
    %8 = math.exp %7 : vector<8x1xf32>
    %9 = arith.addf %6, %8 : vector<8x1xf32>
    %10 = math.log %9 : vector<8x1xf32>
    %11 = arith.addf %4, %10 : vector<8x1xf32>
    %c0_1 = arith.constant 0 : index
    %c0_2 = arith.constant 0 : index
    %12 = vector.load %arg2[%c0_1, %c0_2] : memref<8x2xf32, #tpu.memory_space<vmem>>, vector<8x2xf32>
    %13 = vector.extract_strided_slice %12 {offsets = [0, 1], sizes = [8, 1], strides = [1, 1]} : vector<8x2xf32> to vector<8x1xf32>
    %14 = vector.extract_strided_slice %12 {offsets = [0, 0], sizes = [8, 1], strides = [1, 1]} : vector<8x2xf32> to vector<8x1xf32>
    %15 = vector.extract_strided_slice %12 {offsets = [0, 1], sizes = [8, 1], strides = [1, 1]} : vector<8x2xf32> to vector<8x1xf32>
    %16 = arith.maximumf %14, %15 : vector<8x1xf32>
    %17 = arith.subf %14, %16 : vector<8x1xf32>
    %18 = math.exp %17 : vector<8x1xf32>
    %19 = arith.subf %15, %16 : vector<8x1xf32>
    %20 = math.exp %19 : vector<8x1xf32>
    %21 = arith.addf %18, %20 : vector<8x1xf32>
    %22 = math.log %21 : vector<8x1xf32>
    %23 = arith.addf %16, %22 : vector<8x1xf32>
    %c0_3 = arith.constant 0 : index
    %c0_4 = arith.constant 0 : index
    %24 = vector.load %arg3[%c0_3, %c0_4] : memref<8x2xf32, #tpu.memory_space<vmem>>, vector<8x2xf32>
    %25 = vector.extract_strided_slice %24 {offsets = [0, 0], sizes = [8, 1], strides = [1, 1]} : vector<8x2xf32> to vector<8x1xf32>
    %26 = vector.extract_strided_slice %24 {offsets = [0, 0], sizes = [8, 1], strides = [1, 1]} : vector<8x2xf32> to vector<8x1xf32>
    %27 = vector.extract_strided_slice %24 {offsets = [0, 1], sizes = [8, 1], strides = [1, 1]} : vector<8x2xf32> to vector<8x1xf32>
    %28 = arith.maximumf %26, %27 : vector<8x1xf32>
    %29 = arith.subf %26, %28 : vector<8x1xf32>
    %30 = math.exp %29 : vector<8x1xf32>
    %31 = arith.subf %27, %28 : vector<8x1xf32>
    %32 = math.exp %31 : vector<8x1xf32>
    %33 = arith.addf %30, %32 : vector<8x1xf32>
    %34 = math.log %33 : vector<8x1xf32>
    %35 = arith.addf %28, %34 : vector<8x1xf32>
    %c0_5 = arith.constant 0 : index
    %c0_6 = arith.constant 0 : index
    %36 = vector.load %arg4[%c0_5, %c0_6] : memref<8x2xf32, #tpu.memory_space<vmem>>, vector<8x2xf32>
    %37 = vector.extract_strided_slice %36 {offsets = [0, 1], sizes = [8, 1], strides = [1, 1]} : vector<8x2xf32> to vector<8x1xf32>
    %38 = vector.extract_strided_slice %36 {offsets = [0, 0], sizes = [8, 1], strides = [1, 1]} : vector<8x2xf32> to vector<8x1xf32>
    %39 = vector.extract_strided_slice %36 {offsets = [0, 1], sizes = [8, 1], strides = [1, 1]} : vector<8x2xf32> to vector<8x1xf32>
    %40 = arith.maximumf %38, %39 : vector<8x1xf32>
    %41 = arith.subf %38, %40 : vector<8x1xf32>
    %42 = math.exp %41 : vector<8x1xf32>
    %43 = arith.subf %39, %40 : vector<8x1xf32>
    %44 = math.exp %43 : vector<8x1xf32>
    %45 = arith.addf %42, %44 : vector<8x1xf32>
    %46 = math.log %45 : vector<8x1xf32>
    %47 = arith.addf %40, %46 : vector<8x1xf32>
    %48 = arith.subf %11, %1 : vector<8x1xf32>
    %49 = vector.shape_cast %48 : vector<8x1xf32> to vector<1x8x1xf32>
    %cst = arith.constant dense<0.000000e+00> : vector<1xf32>
    %50 = vector.multi_reduction <add>, %49, %cst [1, 2] : vector<1x8x1xf32> to vector<1xf32>
    %51 = vector.shape_cast %50 : vector<1xf32> to vector<1x1x1xf32>
    %52 = vector.extract %51[0, 0, 0] : f32 from vector<1x1x1xf32>
    %53 = arith.subf %23, %13 : vector<8x1xf32>
    %54 = vector.shape_cast %53 : vector<8x1xf32> to vector<1x8x1xf32>
    %cst_7 = arith.constant dense<0.000000e+00> : vector<1xf32>
    %55 = vector.multi_reduction <add>, %54, %cst_7 [1, 2] : vector<1x8x1xf32> to vector<1xf32>
    %56 = vector.shape_cast %55 : vector<1xf32> to vector<1x1x1xf32>
    %57 = vector.extract %56[0, 0, 0] : f32 from vector<1x1x1xf32>
    %58 = arith.addf %52, %57 : f32
    %cst_8 = arith.constant 1.250000e-01 : f32
    %59 = arith.mulf %58, %cst_8 : f32
    %60 = arith.subf %25, %35 : vector<8x1xf32>
    %61 = math.exp %60 : vector<8x1xf32>
    %62 = vector.shape_cast %61 : vector<8x1xf32> to vector<1x8x1xf32>
    %cst_9 = arith.constant dense<0.000000e+00> : vector<1xf32>
    %63 = vector.multi_reduction <add>, %62, %cst_9 [1, 2] : vector<1x8x1xf32> to vector<1xf32>
    %64 = vector.shape_cast %63 : vector<1xf32> to vector<1x1x1xf32>
    %65 = vector.extract %64[0, 0, 0] : f32 from vector<1x1x1xf32>
    %66 = arith.subf %37, %47 : vector<8x1xf32>
    %67 = math.exp %66 : vector<8x1xf32>
    %68 = vector.shape_cast %67 : vector<8x1xf32> to vector<1x8x1xf32>
    %cst_10 = arith.constant dense<0.000000e+00> : vector<1xf32>
    %69 = vector.multi_reduction <add>, %68, %cst_10 [1, 2] : vector<1x8x1xf32> to vector<1xf32>
    %70 = vector.shape_cast %69 : vector<1xf32> to vector<1x1x1xf32>
    %71 = vector.extract %70[0, 0, 0] : f32 from vector<1x1x1xf32>
    %72 = arith.addf %65, %71 : f32
    %cst_11 = arith.constant 1.250000e-01 : f32
    %73 = arith.mulf %72, %cst_11 : f32
    %c0_12 = arith.constant 0 : index
    %c0_13 = arith.constant 0 : index
    %74 = memref.load %arg0[%c0_12, %c0_13] : memref<1x1xf32, #tpu.memory_space<smem>>
    %75 = arith.mulf %74, %73 : f32
    %76 = arith.addf %59, %75 : f32
    %c0_14 = arith.constant 0 : index
    %77 = memref.load %arg5[%c0_14] : memref<1xf32, #tpu.memory_space<smem>>
    memref.store %76, %arg5[%c0_14] : memref<1xf32, #tpu.memory_space<smem>>
    return
  }
}

</mosaic_0001>

<llo_original>
// kernel: tpu_custom_call.1
$region0: #{tpu_custom_call.1}
  #allocation0 [shape = 'u32[]', space=smem, size = 0x4, offset = 0x4, fixed_abs, tag = 'smem constant byte address 0x4 - core index']
  #allocation1 [shape = 'u32[144,128]{1,0:T(1,128)}', space=vmem, size = 0x12000, scoped, tag = 'internal scratch']
  #allocation2 [shape = 'f32[1,1]{1,0:T(1,128)S(6)}', space=smem, size = 0x200, scoped, tag = 'scoped memory for tpu_custom_call.1']
  %s0 = inlined_call_operand.<no memory space> [shape: f32[1,1], index: 0, kind: input, shape index: {}]
  %s1 = inlined_call_operand.vmem [shape: f32[8,2], index: 1, kind: input, shape index: {}]
  %s2 = inlined_call_operand.vmem [shape: f32[8,2], index: 2, kind: input, shape index: {}]
  %s3 = inlined_call_operand.vmem [shape: f32[8,2], index: 3, kind: input, shape index: {}]
  %s4 = inlined_call_operand.vmem [shape: f32[8,2], index: 4, kind: input, shape index: {}]
  %s5 = inlined_call_operand.hbm [shape: f32[1], index: 5, kind: output, shape index: {}]
  %s6 = sld [smem:[#allocation0]]
  $region30: #{tpu_custom_call.1} parent=0
    _
  %s8 = ssub.s32 1, %s6
  %s9 = scalar_select 0, %s8, %s6
  %10 = sst [smem:[#allocation2]] %s0
  $region1: #{tpu_custom_call.1} parent=0
    #allocation3 [shape = 'u8[512]{0}', space=smem, size = 0x200, scoped, tag = 'output window, operand 0, single buffered']
    #allocation4 [shape = 's32[1]{0}', space=sflag, size = 0x4, scoped, tag = 'scoped memory for tpu_custom_call.1']
    %11 = vsyncpa [#allocation4], 0
    // Predicated region
    $region2: #{tpu_custom_call.1} parent=1 // pred_check
      _
    $region3: #{tpu_custom_call.1} parent=1 // pred_check_branch
      %13 = sbr.rel (0) target = $region5
    $region4: #{tpu_custom_call.1} parent=1 // pred_region
      _
    $region5: #{tpu_custom_call.1} parent=1 // pred_fallthru
      _
    // Predicated region
    $region6: #{tpu_custom_call.1} parent=1 // pred_check
      _
    $region7: #{tpu_custom_call.1} parent=1 // pred_check_branch
      %15 = sbr.rel (0) target = $region9
    $region8: #{tpu_custom_call.1} parent=1 // pred_region
      _
    $region9: #{tpu_custom_call.1} parent=1 // pred_fallthru
      _
    // Predicated region
    $region10: #{tpu_custom_call.1} parent=1 // pred_check
      _
    $region11: #{tpu_custom_call.1} parent=1 // pred_check_branch
      %17 = sbr.rel (0) target = $region13
    $region12: #{tpu_custom_call.1} parent=1 // pred_region
      _
    $region13: #{tpu_custom_call.1} parent=1 // pred_fallthru
      _
    // Predicated region
    $region14: #{tpu_custom_call.1} parent=1 // pred_check
      _
    $region15: #{tpu_custom_call.1} parent=1 // pred_check_branch
      %19 = sbr.rel (0) target = $region17
    $region16: #{tpu_custom_call.1} parent=1 // pred_region
      _
    $region17: #{tpu_custom_call.1} parent=1 // pred_fallthru
      _
    // Predicated region
    $region18: #{tpu_custom_call.1} parent=1 // pred_check
      _
    $region19: #{tpu_custom_call.1} parent=1 // pred_check_branch
      %21 = sbr.rel (0) target = $region21
    $region20: #{tpu_custom_call.1} parent=1 // pred_region
      _
    $region21: #{tpu_custom_call.1} parent=1 // pred_fallthru
      _
    %v22 = vld [vmem:[%s1] sm:$0xff]
    %24 = vrot.lane.b32.xlu0 %v22, 127
    %v25 = vpop.permute.xlu0 %24
    %v27 = vmax.f32 %v22, %v25
    %v28 = vsub.f32 %v22, %v27
    %v29 = vmul.f32 %v28, 1.442695
    %v30 = vpow.pop %v29
    %32 = vrot.lane.b32.xlu0 %v27, 1
    %v33 = vpop.permute.xlu0 %32
    %v35 = vsub.f32 %v22, %v33
    %v36 = vmul.f32 %v35, 1.442695
    %v37 = vpow.pop %v36
    %39 = vrot.lane.b32.xlu0 %v37, 127
    %v40 = vpop.permute.xlu0 %39
    %v42 = vadd.f32 %v30, %v40
    %v43 = vlog2.pop %v42
    %v44 = vmul.f32 %v43, 0.6931472
    %v45 = vadd.f32 %v27, %v44
    %v46 = vld [vmem:[%s2] sm:$0xff]
    %48 = vrot.lane.b32.xlu0 %v46, 127
    %v49 = vpop.permute.xlu0 %48
    %v51 = vmax.f32 %v46, %v49
    %v52 = vsub.f32 %v46, %v51
    %v53 = vmul.f32 %v52, 1.442695
    %v54 = vpow.pop %v53
    %56 = vrot.lane.b32.xlu0 %v51, 1
    %v57 = vpop.permute.xlu0 %56
    %v59 = vsub.f32 %v46, %v57
    %v60 = vmul.f32 %v59, 1.442695
    %v61 = vpow.pop %v60
    %63 = vrot.lane.b32.xlu0 %v61, 127
    %v64 = vpop.permute.xlu0 %63
    %v66 = vadd.f32 %v54, %v64
    %v67 = vlog2.pop %v66
    %v68 = vmul.f32 %v67, 0.6931472
    %v69 = vadd.f32 %v51, %v68
    %v70 = vld [vmem:[%s3] sm:$0xff]
    %72 = vrot.lane.b32.xlu0 %v70, 127
    %v73 = vpop.permute.xlu0 %72
    %v75 = vmax.f32 %v70, %v73
    %v76 = vsub.f32 %v70, %v75
    %v77 = vmul.f32 %v76, 1.442695
    %v78 = vpow.pop %v77
    %80 = vrot.lane.b32.xlu0 %v75, 1
    %v81 = vpop.permute.xlu0 %80
    %v83 = vsub.f32 %v70, %v81
    %v84 = vmul.f32 %v83, 1.442695
    %v85 = vpow.pop %v84
    %87 = vrot.lane.b32.xlu0 %v85, 127
    %v88 = vpop.permute.xlu0 %87
    %v90 = vadd.f32 %v78, %v88
    %v91 = vlog2.pop %v90
    %v92 = vmul.f32 %v91, 0.6931472
    %v93 = vadd.f32 %v75, %v92
    %v94 = vld [vmem:[%s4] sm:$0xff]
    %96 = vrot.lane.b32.xlu0 %v94, 127
    %v97 = vpop.permute.xlu0 %96
    %v99 = vmax.f32 %v94, %v97
    %v100 = vsub.f32 %v94, %v99
    %v101 = vmul.f32 %v100, 1.442695
    %v102 = vpow.pop %v101
    %104 = vrot.lane.b32.xlu0 %v99, 1
    %v105 = vpop.permute.xlu0 %104
    %v107 = vsub.f32 %v94, %v105
    %v108 = vmul.f32 %v107, 1.442695
    %v109 = vpow.pop %v108
    %111 = vrot.lane.b32.xlu0 %v109, 127
    %v112 = vpop.permute.xlu0 %111
    %v114 = vadd.f32 %v102, %v112
    %v115 = vlog2.pop %v114
    %v116 = vmul.f32 %v115, 0.6931472
    %v117 = vadd.f32 %v99, %v116
    %v118 = vsub.f32 %v45, %v22
    %vm119 = vcmask 7168
    %v120 = vsel %vm119, %v118, 0.0
    %121 = vadd.xlane.f32.xlu0 %v120
    %v122 = vpop.xlane.xlu0 %121
    %v123 = vrot.slane %v122, 4
    %v124 = vadd.f32 %v122, %v123
    %v125 = vrot.slane %v124, 2
    %v126 = vadd.f32 %v124, %v125
    %v127 = vrot.slane %v126, 1
    %v128 = vadd.f32 %v126, %v127
    %s129 = vtos %v128
    %v130 = vsub.f32 %v69, %v49
    %v131 = vsel %vm119, %v130, 0.0
    %132 = vadd.xlane.f32.xlu0 %v131
    %v133 = vpop.xlane.xlu0 %132
    %v134 = vrot.slane %v133, 4
    %v135 = vadd.f32 %v133, %v134
    %v136 = vrot.slane %v135, 2
    %v137 = vadd.f32 %v135, %v136
    %v138 = vrot.slane %v137, 1
    %v139 = vadd.f32 %v137, %v138
    %s140 = vtos %v139
    %s141 = sadd.f32 %s129, %s140
    %s142 = smul.f32 %s141, 0.125
    %v143 = vsub.f32 %v70, %v93
    %v144 = vmul.f32 %v143, 1.442695
    %v145 = vpow.pop %v144
    %v146 = vsel %vm119, %v145, 0.0
    %147 = vadd.xlane.f32.xlu0 %v146
    %v148 = vpop.xlane.xlu0 %147
    %v149 = vrot.slane %v148, 4
    %v150 = vadd.f32 %v148, %v149
    %v151 = vrot.slane %v150, 2
    %v152 = vadd.f32 %v150, %v151
    %v153 = vrot.slane %v152, 1
    %v154 = vadd.f32 %v152, %v153
    %s155 = vtos %v154
    %157 = vrot.lane.b32.xlu0 %v117, 1
    %v158 = vpop.permute.xlu0 %157
    %v160 = vsub.f32 %v94, %v158
    %v161 = vmul.f32 %v160, 1.442695
    %v162 = vpow.pop %v161
    %164 = vrot.lane.b32.xlu0 %v162, 127
    %v165 = vpop.permute.xlu0 %164
    %v167 = vsel %vm119, %v165, 0.0
    %168 = vadd.xlane.f32.xlu0 %v167
    %v169 = vpop.xlane.xlu0 %168
    %v170 = vrot.slane %v169, 4
    %v171 = vadd.f32 %v169, %v170
    %v172 = vrot.slane %v171, 2
    %v173 = vadd.f32 %v171, %v172
    %v174 = vrot.slane %v173, 1
    %v175 = vadd.f32 %v173, %v174
    %s176 = vtos %v175
    %s177 = sadd.f32 %s155, %s176
    %s178 = smul.f32 %s177, 0.125
    %s179 = sld [smem:[#allocation2]]
    %s180 = smul.f32 %s179, %s178
    %s181 = sadd.f32 %s142, %s180
    %s182 = scalar_lea.smem [#allocation3], 0
    %183 = sst [smem:[%s182]] %s181
    // Predicated region
    $region22: #{tpu_custom_call.1} parent=1 // pred_check
      _
    $region23: #{tpu_custom_call.1} parent=1 // pred_check_branch
      %185 = sbr.rel (0) target = $region25
    $region24: #{tpu_custom_call.1} parent=1 // pred_region
      %s187 = ssub.s32 16, 16
      %188 = vsyncadd [#allocation4], %s187
      %191 = dma.smem_to_hbm [#allocation3], 16, %s5, [#allocation4]
    $region25: #{tpu_custom_call.1} parent=1 // pred_fallthru
      _
    // Predicated region
    $region26: #{tpu_custom_call.1} parent=1 // pred_check
      _
    $region27: #{tpu_custom_call.1} parent=1 // pred_check_branch
      %193 = sbr.rel (0) target = $region29
    $region28: #{tpu_custom_call.1} parent=1 // pred_region
      %194 = dma.done [#allocation4], 16
    $region29: #{tpu_custom_call.1} parent=1 // pred_fallthru
      _
    %195 = sfence
    %196 = vsyncpa [#allocation4], 1

</llo_original>
